<compile_context>
chip_gen: v7x
topology: tpu7x:2x2x1
jax: 0.10.0
libtpu: 0.0.40
codegen_flags: <defaults>
</compile_context>

<pallas_src>
import jax
import jax.numpy as jnp
from jax.experimental import pallas as pl
from jax.experimental.pallas import tpu as pltpu


_MAX_TC = 4096  # cap on lane-tile width (elements)


def _round_up(x: int, m: int) -> int:
    return ((x + m - 1) // m) * m


def _sublane_multiple(dtype) -> int:
    # f32 -> 8, bf16 -> 16, int8/fp8 -> 32 (packed sublanes).
    itemsize = jnp.dtype(dtype).itemsize
    return 8 * max(1, 4 // max(1, itemsize))


def _tpu_tuning():
    """Returns (per-step VMEM working-set budget bytes, vmem_limit_bytes, TCs/chip)."""
    kind = ""
    try:
        kind = (getattr(jax.devices()[0], "device_kind", "") or "").lower()
    except Exception:
        pass
    if "v7" in kind or "7x" in kind:
        # 3.2 TB/s HBM: short steps -> bigger tiles; 64 MiB physical VMEM/TC; 2 TCs.
        return 20 * 1024 * 1024, 44 * 1024 * 1024, 2
    if "v6" in kind:
        # 1.4 TB/s HBM; 128 MiB VMEM.
        return 14 * 1024 * 1024, 40 * 1024 * 1024, 1
    # v5e / v4 / unknown: ~0.82 TB/s -> ~3 MiB steps already amortize overhead.
    return 6 * 1024 * 1024, 32 * 1024 * 1024, 1


def _glu_split_kernel(a_ref, b_ref, o_ref):
    # a_ref / b_ref / o_ref tiles: (TR, TC), all lane-aligned (TC % 128 == 0).
    a = a_ref[...].astype(jnp.float32)
    b = b_ref[...].astype(jnp.float32)
    # sigmoid -> EUP (exp + reciprocal), multiply -> VPU; cast the product once.
    o_ref[...] = (a * jax.nn.sigmoid(b)).astype(o_ref.dtype)


def _glu_fullwidth_kernel(x_ref, o_ref):
    # Fallback for hidden sizes whose half is not a multiple of 128:
    # full-width (TR, H) input block, full-half (TR, H/2) output block.
    h = o_ref.shape[-1]
    a = x_ref[:, :h].astype(jnp.float32)
    b = x_ref[:, h:].astype(jnp.float32)
    o_ref[...] = (a * jax.nn.sigmoid(b)).astype(o_ref.dtype)


def glu(x):
    if x.shape[-1] % 2 != 0:
        raise ValueError("Input dimension must be even")
    H = x.shape[-1]
    half = H // 2
    lead = x.shape[:-1]
    rows = 1
    for d in lead:
        rows *= d

    dtype = x.dtype
    # Zero-sized inputs: nothing to compute.
    if rows == 0 or half == 0:
        return jnp.zeros((*lead, half), dtype=dtype)

    x2 = x.reshape(rows, H)
    itemsize = jnp.dtype(dtype).itemsize
    sub = _sublane_multiple(dtype)
    budget, vmem_limit, n_cores = _tpu_tuning()

    cost = pl.CostEstimate(
        flops=4 * rows * half,
        transcendentals=rows * half,
        bytes_accessed=(rows * H + rows * half) * itemsize,
    )

    if half % 128 == 0:
        # ---------- optimized path: 2-D tiling, two lane-aligned views of x2 ----------
        # tc = largest multiple-of-128 divisor of half, capped at _MAX_TC.
        half_blocks = half // 128
        nb = 1
        for cand in range(min(half_blocks, _MAX_TC // 128), 0, -1):
            if half_blocks % cand == 0:
                nb = cand
                break
        tc = 128 * nb
        ncol = half // tc  # column-block offset of the gate half

        # Element budget per step: double-buffered 2 * (a_tile + b_tile + out_tile).
        max_elems = max(sub * tc, budget // (6 * itemsize))
        tr = max(sub, ((max_elems // tc) // sub) * sub)
        tr = min(tr, _round_up(rows, sub))

        # Multi-TC chips: make sure there are >= 2 grid steps to shard/pipeline.
        if n_cores >= 2 and pl.cdiv(rows, tr) * ncol == 1 and rows > sub:
            tr = max(sub, _round_up(pl.cdiv(rows, 2), sub))

        grid = (pl.cdiv(rows, tr), ncol)
        out2 = pl.pallas_call(
            _glu_split_kernel,
            out_shape=jax.ShapeDtypeStruct((rows, half), dtype),
            grid_spec=pltpu.PrefetchScalarGridSpec(
                num_scalar_prefetch=0,
                grid=grid,
                in_specs=[
                    pl.BlockSpec((tr, tc), lambda i, j: (i, j)),          # a = x[:, :half]
                    pl.BlockSpec((tr, tc), lambda i, j: (i, j + ncol)),   # b = x[:, half:]
                ],
                out_specs=pl.BlockSpec((tr, tc), lambda i, j: (i, j)),
            ),
            compiler_params=pltpu.CompilerParams(
                dimension_semantics=("parallel", "parallel"),
                vmem_limit_bytes=vmem_limit,
            ),
            cost_estimate=cost,
        )(x2, x2)
    else:
        # ---------- fallback: half not a multiple of 128 ----------
        # TODO(synk): odd halves hit a lane-misaligned in-kernel slice + masked
        # stores; a padded lane-aligned rewrite is possible if such shapes matter.
        # Working set per step (double-buffered): 2 * (tr*H + tr*half) = 3*tr*H.
        tr = max(sub, ((budget // (3 * H * itemsize)) // sub) * sub)
        tr = min(tr, _round_up(rows, sub))
        if n_cores >= 2 and pl.cdiv(rows, tr) == 1 and rows > sub:
            tr = max(sub, _round_up(pl.cdiv(rows, 2), sub))
        grid = (pl.cdiv(rows, tr),)
        out2 = pl.pallas_call(
            _glu_fullwidth_kernel,
            out_shape=jax.ShapeDtypeStruct((rows, half), dtype),
            grid_spec=pltpu.PrefetchScalarGridSpec(
                num_scalar_prefetch=0,
                grid=grid,
                in_specs=[pl.BlockSpec((tr, H), lambda i: (i, 0))],
                out_specs=pl.BlockSpec((tr, half), lambda i: (i, 0)),
            ),
            compiler_params=pltpu.CompilerParams(
                dimension_semantics=("parallel",),
                vmem_limit_bytes=vmem_limit,
            ),
            cost_estimate=cost,
        )(x2)

    return out2.reshape(*lead, half)


if __name__ == "__main__":
    key = jax.random.PRNGKey(0)
    k1, k2, k3, k4 = jax.random.split(key, 4)

    def ref_glu(x):
        h = x.shape[-1] // 2
        return x[..., :h] * jax.nn.sigmoid(x[..., h:])

    # 1) small hidden (half=16) -> fallback full-width path
    x_small = jax.random.normal(k1, (2, 8, 32), dtype=jnp.float32)
    out_small = jax.block_until_ready(glu(x_small))
    assert out_small.shape == (2, 8, 16)
    assert jnp.allclose(out_small, ref_glu(x_small), atol=1e-6, rtol=1e-6)

    # 2) lane-aligned hidden (half=128) -> optimized 2-D split path (tc = half)
    x_big = jax.random.normal(k2, (2, 8, 256), dtype=jnp.float32)
    out_big = jax.block_until_ready(glu(x_big))
    assert out_big.shape == (2, 8, 128)
    assert jnp.allclose(out_big, ref_glu(x_big), atol=1e-6, rtol=1e-6)

    # 3) ragged row count (rows=15) -> ceil-div grid, masked edge block
    x_rag = jax.random.normal(k3, (3, 5, 256), dtype=jnp.float32)
    out_rag = jax.block_until_ready(glu(x_rag))
    assert out_rag.shape == (3, 5, 128)
    assert jnp.allclose(out_rag, ref_glu(x_rag), atol=1e-6, rtol=1e-6)

    # 4) non-power-of-two lane-aligned half (half=384) -> tc = half divisor path
    x_odd = jax.random.normal(k4, (4, 768), dtype=jnp.float32)
    out_odd = jax.block_until_ready(glu(x_odd))
    assert out_odd.shape == (4, 384)
    assert jnp.allclose(out_odd, ref_glu(x_odd), atol=1e-6, rtol=1e-6)

    # 5) zero-sized leading dim -> early return, no pallas_call
    x_zero = jnp.zeros((0, 8, 256), dtype=jnp.float32)
    out_zero = glu(x_zero)
    assert out_zero.shape == (0, 8, 128)

    print("KERNEL_OK")
</pallas_src>

<mosaic_0001>
module attributes {stable_mosaic.version = 11 : i64} {
  func.func @_glu_fullwidth_kernel(%arg0: i32, %arg1: memref<16x32xf32, #tpu.memory_space<vmem>>, %arg2: memref<16x16xf32, #tpu.memory_space<vmem>>) attributes {dimension_semantics = [#tpu.dimension_semantics<parallel>], iteration_bounds = array<i64: 1>, scalar_prefetch = 0 : i64, scratch_operands = 0 : i64, tpu.core_type = #tpu.core_type<tc>, window_params = [{transform_indices = @transform_0, window_bounds = array<i64: 16, 32>}, {transform_indices = @transform_1, window_bounds = array<i64: 16, 16>}]} {
    %c0 = arith.constant 0 : index
    %c0_0 = arith.constant 0 : index
    %0 = vector.load %arg1[%c0, %c0_0] : memref<16x32xf32, #tpu.memory_space<vmem>>, vector<16x16xf32>
    %c0_1 = arith.constant 0 : index
    %c16 = arith.constant 16 : index
    %1 = vector.load %arg1[%c0_1, %c16] : memref<16x32xf32, #tpu.memory_space<vmem>>, vector<16x16xf32>
    %2 = arith.negf %1 : vector<16x16xf32>
    %3 = math.exp %2 : vector<16x16xf32>
    %cst = arith.constant 1.000000e+00 : f32
    %4 = vector.broadcast %cst : f32 to vector<16x16xf32>
    %5 = arith.addf %4, %3 : vector<16x16xf32>
    %6 = arith.divf %4, %5 : vector<16x16xf32>
    %7 = arith.mulf %0, %6 : vector<16x16xf32>
    %c0_2 = arith.constant 0 : index
    %c0_3 = arith.constant 0 : index
    %8 = vector.load %arg2[%c0_2, %c0_3] : memref<16x16xf32, #tpu.memory_space<vmem>>, vector<16x16xf32>
    tpu.vector_store %arg2[%c0_2, %c0_3], %7 {strides = array<i32>} : memref<16x16xf32, #tpu.memory_space<vmem>>, vector<16x16xf32>,
    return
  }
  func.func @transform_0(%arg0: i32) -> (i32, i32) {
    %c0_i32 = arith.constant 0 : i32
    %c0_i32_0 = arith.constant 0 : i32
    return %arg0, %c0_i32 : i32, i32
  }
  func.func @transform_1(%arg0: i32) -> (i32, i32) {
    %c0_i32 = arith.constant 0 : i32
    %c0_i32_0 = arith.constant 0 : i32
    return %arg0, %c0_i32 : i32, i32
  }
}

</mosaic_0001>

<llo_original>
// kernel: tpu_custom_call.1
$region0: #{tpu_custom_call.1}
  #allocation0 [shape = 'u32[]', space=smem, size = 0x4, offset = 0x4, fixed_abs, tag = 'smem constant byte address 0x4 - core index']
  #allocation1 [shape = 'u32[144,128]{1,0:T(1,128)}', space=vmem, size = 0x12000, scoped, tag = 'internal scratch']
  %s0 = inlined_call_operand.hbm [shape: f32[16,32], index: 0, kind: input, shape index: {}]
  %s1 = inlined_call_operand.hbm [shape: f32[16,16], index: 1, kind: output, shape index: {}]
  %s2 = sld [smem:[#allocation0]]
  $region18: #{tpu_custom_call.1} parent=0
    _
  %s4 = ssub.s32 1, %s2
  %s5 = scalar_select 0, %s4, %s2
  $region1: #{tpu_custom_call.1} parent=0
    #allocation2 [shape = 'u8[8192]{0}', space=vmem, size = 0x2000, scoped, tag = 'input window, operand 0, single buffered']
    #allocation3 [shape = 's32[1]{0}', space=sflag, size = 0x4, scoped, tag = 'scoped memory for tpu_custom_call.1']
    #allocation4 [shape = 's32[1]{0}', space=sflag, size = 0x4, scoped, tag = 'scoped memory for tpu_custom_call.1']
    #allocation5 [shape = 'u8[8192]{0}', space=vmem, size = 0x2000, scoped, tag = 'output window, operand 0, single buffered']
    %6 = vsyncpa [#allocation3], 0
    %7 = vsyncpa [#allocation4], 0
    // Predicated region
    $region2: #{tpu_custom_call.1} parent=1 // pred_check
      _
    $region3: #{tpu_custom_call.1} parent=1 // pred_check_branch
      %9 = sbr.rel (0) target = $region5
    $region4: #{tpu_custom_call.1} parent=1 // pred_region
      %s11 = ssub.s32 256, 256
      %12 = vsyncadd [#allocation3], %s11
      %s13 = sshll.u32 [#allocation2], 4
      %s14 = int_to_ptr.vmem [resolvable:$true] %s13
      %19 = dma.hbm_to_vmem [thread:$0]  %s0, 256, %s14, [#allocation3], 128, 128, 8
    $region5: #{tpu_custom_call.1} parent=1 // pred_fallthru
      _
    // Predicated region
    $region6: #{tpu_custom_call.1} parent=1 // pred_check
      _
    $region7: #{tpu_custom_call.1} parent=1 // pred_check_branch
      %21 = sbr.rel (0) target = $region9
    $region8: #{tpu_custom_call.1} parent=1 // pred_region
      %22 = dma.done [#allocation3], 256
    $region9: #{tpu_custom_call.1} parent=1 // pred_fallthru
      _
    %v23 = vld [vmem:[#allocation2] sm:$0xff]
    %v24 = vld [vmem:[#allocation2 + $0x8] sm:$0xff]
    %v25 = vxor.u32 %v23, 2147483648
    %v26 = vxor.u32 %v24, 2147483648
    %v27 = vmul.f32 %v25, 1.442695
    %v28 = vpow.pop %v27
    %v29 = vmul.f32 %v26, 1.442695
    %v30 = vpow.pop %v29
    %v31 = vadd.f32 %v28, 1.0
    %v32 = vadd.f32 %v30, 1.0
    %v33 = vrcp.pop %v31
    %v34 = vmul.f32 1.0, %v33
    %v35 = vrcp.pop %v32
    %v36 = vmul.f32 1.0, %v35
    %39 = vrot.lane.b32.xlu0 %v34, 112
    %v40 = vpop.permute.xlu0 %39
    %41 = vrot.lane.b32.xlu0 %v36, 112
    %v42 = vpop.permute.xlu0 %41
    %v45 = vmul.f32 %v23, %v40
    %v46 = vmul.f32 %v24, %v42
    %vm47 = vcmask 130048
    %48 = vst.msk [vmem:[#allocation5] sm:$0xff] %vm47, %v45
    %49 = vst.msk [vmem:[#allocation5 + $0x8] sm:$0xff] %vm47, %v46
    // Predicated region
    $region10: #{tpu_custom_call.1} parent=1 // pred_check
      _
    $region11: #{tpu_custom_call.1} parent=1 // pred_check_branch
      %51 = sbr.rel (0) target = $region13
    $region12: #{tpu_custom_call.1} parent=1 // pred_region
      %s53 = ssub.s32 256, 256
      %54 = vsyncadd [#allocation4], %s53
      %s55 = sshll.u32 [#allocation5], 4
      %s56 = int_to_ptr.vmem [resolvable:$true] %s55
      %61 = dma.vmem_to_hbm [thread:$0]  %s56, 256, %s1, [#allocation4], 128, 128, 8
    $region13: #{tpu_custom_call.1} parent=1 // pred_fallthru
      _
    // Predicated region
    $region14: #{tpu_custom_call.1} parent=1 // pred_check
      _
    $region15: #{tpu_custom_call.1} parent=1 // pred_check_branch
      %63 = sbr.rel (0) target = $region17
    $region16: #{tpu_custom_call.1} parent=1 // pred_region
      %64 = dma.done [#allocation4], 256
    $region17: #{tpu_custom_call.1} parent=1 // pred_fallthru
      _
    %65 = vsyncpa [#allocation3], 1
    %66 = vsyncpa [#allocation4], 1

</llo_original>
